<compile_context>
chip_gen: v5e
topology: v5e:2x2
jax: 0.10.0
libtpu: 0.0.40
codegen_flags: <defaults>
</compile_context>

<pallas_src>
import jax
import jax.numpy as jnp
from jax.experimental import pallas as pl
from jax.experimental.pallas import tpu as pltpu


def _linear_kernel(x_ref, w_ref, b_ref, o_ref):
    # x_ref: (tm, K), w_ref: (K, tn), b_ref: (1, tn), o_ref: (tm, tn)
    acc = jnp.dot(x_ref[...], w_ref[...], preferred_element_type=jnp.float32)
    o_ref[...] = (acc + b_ref[...]).astype(o_ref.dtype)


def _round_up(x, m):
    return ((x + m - 1) // m) * m


def _vmem_capacity_bytes():
    try:
        return int(pltpu.get_tpu_info().vmem_capacity_bytes)
    except Exception:
        return 64 << 20  # conservative fallback (v7x per-TC VMEM)


def _choose_tiles(M, K, N):
    """Pick (tm, tn, vmem_limit_bytes) from the chip's VMEM capacity."""
    capacity = _vmem_capacity_bytes()
    # Leave headroom under physical VMEM for compiler scratch / semaphores.
    budget = max(8 << 20, min(capacity - (16 << 20), 96 << 20))

    # N tile: full width for modest input_dim (keeps W fully resident);
    # lane-aligned chunks once input_dim gets large.
    tn = N if N <= 2048 else 2048

    k_lanes = _round_up(K, 128)       # the (tm, K) X block is lane-padded in VMEM
    tn_lanes = _round_up(tn, 128)
    k_sub = _round_up(K, 8)

    # Resident W + bias (counted with two buffers, conservatively).
    resident = 2 * 4 * (k_sub * tn_lanes + tn_lanes)
    # Streaming VMEM bytes per row of the M tile (X + out, double-buffered).
    per_row = 2 * 4 * (k_lanes + tn_lanes)

    tm = (budget - resident) // per_row
    tm = int(max(8, min(tm, 16384)))
    tm = (tm // 8) * 8

    vmem_limit = int(min(max(capacity - (4 << 20), 32 << 20), capacity))
    return tm, tn, vmem_limit


def decoder_forward(data, weight_t, bias):
    """data: (..., latent_dim) float32
    weight_t: (latent_dim, input_dim)  (PyTorch W of shape (out,in), transposed)
    bias: (input_dim,)
    returns: (..., input_dim)
    """
    latent_dim = data.shape[-1]
    input_dim = weight_t.shape[-1]
    lead = data.shape[:-1]

    x = data.reshape(-1, latent_dim)          # (M, K)
    M, K = x.shape
    N = input_dim
    b2d = bias.reshape(1, N)

    tm, tn, vmem_limit = _choose_tiles(M, K, N)

    if M <= tm:
        if M <= 16:
            tm_eff = M                                   # full dim -> always legal
        else:
            # Keep >= 2 row steps so both TensorCores (v7x) get work.
            tm_eff = _round_up(pl.cdiv(M, 2), 8)
    else:
        tm_eff = tm
    grid_m = pl.cdiv(M, tm_eff)
    grid_n = pl.cdiv(N, tn)

    cost = pl.CostEstimate(
        flops=2 * M * K * N,
        transcendentals=0,
        bytes_accessed=4 * (grid_n * M * K + K * N + M * N + N),
    )

    out = pl.pallas_call(
        _linear_kernel,
        out_shape=jax.ShapeDtypeStruct((M, N), data.dtype),
        grid=(grid_n, grid_m),                             # N outer: W tile stays resident
        in_specs=[
            pl.BlockSpec((tm_eff, K), lambda j, i: (i, 0)),   # X: streamed over rows
            pl.BlockSpec((K, tn), lambda j, i: (0, j)),       # W: resident per N tile
            pl.BlockSpec((1, tn), lambda j, i: (0, j)),       # bias
        ],
        out_specs=pl.BlockSpec((tm_eff, tn), lambda j, i: (i, j)),
        compiler_params=pltpu.CompilerParams(
            dimension_semantics=("parallel", "parallel"),
            vmem_limit_bytes=vmem_limit,
        ),
        cost_estimate=cost,
    )(x, weight_t, b2d)

    return out.reshape(*lead, N)


def init_decoder_params(key, latent_dim, input_dim):
    # utils.init_network_weights: normal_(weight, std=0.1), bias = 0
    w = 0.1 * jax.random.normal(key, (input_dim, latent_dim), dtype=jnp.float32)
    b = jnp.zeros((input_dim,), dtype=jnp.float32)
    return w.T, b  # pre-transpose for row-major matmul


if __name__ == "__main__":
    latent_dim = 32
    input_dim = 64
    batch, seq = 2, 8

    key = jax.random.PRNGKey(0)
    k_data, k_w = jax.random.split(key)

    data = jax.random.normal(k_data, (batch, seq, latent_dim), dtype=jnp.float32)
    weight_t, bias = init_decoder_params(k_w, latent_dim, input_dim)

    out = decoder_forward(data, weight_t, bias)
    out = jax.block_until_ready(out)

    # sanity check against plain-JAX reference
    ref = data @ weight_t + bias
    assert out.shape == (batch, seq, input_dim)
    assert jnp.allclose(out, ref, atol=1e-5, rtol=1e-5)

    print("KERNEL_OK")
</pallas_src>

<mosaic_0001>
module attributes {stable_mosaic.version = 11 : i64} {
  func.func @_linear_kernel(%arg0: i32, %arg1: i32, %arg2: memref<16x32xf32, #tpu.memory_space<vmem>>, %arg3: memref<32x64xf32, #tpu.memory_space<vmem>>, %arg4: memref<1x64xf32, #tpu.memory_space<vmem>>, %arg5: memref<16x64xf32, #tpu.memory_space<vmem>>) attributes {dimension_semantics = [#tpu.dimension_semantics<parallel>, #tpu.dimension_semantics<parallel>], iteration_bounds = array<i64: 1, 1>, scalar_prefetch = 0 : i64, scratch_operands = 0 : i64, tpu.core_type = #tpu.core_type<tc>, window_params = [{transform_indices = @transform_0, window_bounds = array<i64: 16, 32>}, {transform_indices = @transform_1, window_bounds = array<i64: 32, 64>}, {transform_indices = @transform_2, window_bounds = array<i64: 1, 64>}, {transform_indices = @transform_3, window_bounds = array<i64: 16, 64>}]} {
    %c0 = arith.constant 0 : index
    %c0_0 = arith.constant 0 : index
    %0 = vector.load %arg2[%c0, %c0_0] : memref<16x32xf32, #tpu.memory_space<vmem>>, vector<16x32xf32>
    %c0_1 = arith.constant 0 : index
    %c0_2 = arith.constant 0 : index
    %1 = vector.load %arg3[%c0_1, %c0_2] : memref<32x64xf32, #tpu.memory_space<vmem>>, vector<32x64xf32>
    %cst = arith.constant dense<0.000000e+00> : vector<16x64xf32>
    %2 = tpu.matmul %0, %1, %cst {dimension_numbers = #tpu.dot_dimension_numbers<[1], [0], [0], [1], [0, 0, 1, 1], [], []>} : vector<16x32xf32>, vector<32x64xf32>, vector<16x64xf32> -> vector<16x64xf32>
    %c0_3 = arith.constant 0 : index
    %c0_4 = arith.constant 0 : index
    %3 = vector.load %arg4[%c0_3, %c0_4] : memref<1x64xf32, #tpu.memory_space<vmem>>, vector<1x64xf32>
    %4 = vector.broadcast %3 : vector<1x64xf32> to vector<16x64xf32>
    %5 = arith.addf %2, %4 : vector<16x64xf32>
    %c0_5 = arith.constant 0 : index
    %c0_6 = arith.constant 0 : index
    %6 = vector.load %arg5[%c0_5, %c0_6] : memref<16x64xf32, #tpu.memory_space<vmem>>, vector<16x64xf32>
    tpu.vector_store %arg5[%c0_5, %c0_6], %5 {strides = array<i32>} : memref<16x64xf32, #tpu.memory_space<vmem>>, vector<16x64xf32>,
    return
  }
  func.func @transform_0(%arg0: i32, %arg1: i32) -> (i32, i32) {
    %c0_i32 = arith.constant 0 : i32
    %c0_i32_0 = arith.constant 0 : i32
    return %arg1, %c0_i32 : i32, i32
  }
  func.func @transform_1(%arg0: i32, %arg1: i32) -> (i32, i32) {
    %c0_i32 = arith.constant 0 : i32
    %c0_i32_0 = arith.constant 0 : i32
    return %c0_i32, %arg0 : i32, i32
  }
  func.func @transform_2(%arg0: i32, %arg1: i32) -> (i32, i32) {
    %c0_i32 = arith.constant 0 : i32
    %c0_i32_0 = arith.constant 0 : i32
    return %c0_i32, %arg0 : i32, i32
  }
  func.func @transform_3(%arg0: i32, %arg1: i32) -> (i32, i32) {
    %c0_i32 = arith.constant 0 : i32
    return %arg1, %arg0 : i32, i32
  }
}

</mosaic_0001>

<llo_original>
// kernel: tpu_custom_call.1
$region0: #{tpu_custom_call.1}
  #allocation0 [shape = 'u32[]', space=smem, size = 0x4, offset = 0x4, fixed_abs, tag = 'smem constant byte address 0x4 - core index']
  #allocation1 [shape = 'u32[72,128]{1,0:T(1,128)}', space=vmem, size = 0x9000, scoped, tag = 'internal scratch']
  %s0 = inlined_call_operand.hbm [shape: f32[16,32], index: 0, kind: input, shape index: {}]
  %s1 = inlined_call_operand.hbm [shape: f32[32,64], index: 1, kind: input, shape index: {}]
  %s2 = inlined_call_operand.vmem [shape: f32[1,64], index: 2, kind: input, shape index: {}]
  %s3 = inlined_call_operand.hbm [shape: f32[16,64], index: 3, kind: output, shape index: {}]
  %s4 = sld [smem:[#allocation0]]
  $region30: #{tpu_custom_call.1} parent=0
    _
  %s6 = ssub.s32 1, %s4
  %s7 = scalar_select 0, %s6, %s4
  $region1: #{tpu_custom_call.1} parent=0
    #allocation2 [shape = 'u8[8192]{0}', space=vmem, size = 0x2000, scoped, tag = 'input window, operand 0, single buffered']
    #allocation3 [shape = 's32[1]{0}', space=sflag, size = 0x4, scoped, tag = 'scoped memory for tpu_custom_call.1']
    #allocation4 [shape = 's32[1]{0}', space=sflag, size = 0x4, scoped, tag = 'scoped memory for tpu_custom_call.1']
    #allocation5 [shape = 'u8[16384]{0}', space=vmem, size = 0x4000, scoped, tag = 'input window, operand 1, single buffered']
    #allocation6 [shape = 's32[1]{0}', space=sflag, size = 0x4, scoped, tag = 'scoped memory for tpu_custom_call.1']
    #allocation7 [shape = 'u8[8192]{0}', space=vmem, size = 0x2000, scoped, tag = 'output window, operand 0, single buffered']
    %8 = vsyncpa [#allocation3], 0
    %9 = vsyncpa [#allocation6], 0
    %10 = vsyncpa [#allocation4], 0
    // Predicated region
    $region2: #{tpu_custom_call.1} parent=1 // pred_check
      _
    $region3: #{tpu_custom_call.1} parent=1 // pred_check_branch
      %12 = sbr.rel (0) target = $region5
    $region4: #{tpu_custom_call.1} parent=1 // pred_region
      %14 = vsyncadd [#allocation3], 0
      %s15 = sshll.u32 %s0, 4
      %s16 = int_to_ptr.hbm [resolvable:$true] %s15
      %s17 = sshll.u32 [#allocation2], 4
      %s18 = int_to_ptr.vmem [resolvable:$true] %s17
      %23 = dma.hbm_to_vmem [thread:$0]  %s16, 256, %s18, [#allocation3], 128, 128, 8
    $region5: #{tpu_custom_call.1} parent=1 // pred_fallthru
      _
    // Predicated region
    $region6: #{tpu_custom_call.1} parent=1 // pred_check
      _
    $region7: #{tpu_custom_call.1} parent=1 // pred_check_branch
      %25 = sbr.rel (0) target = $region9
    $region8: #{tpu_custom_call.1} parent=1 // pred_region
      %27 = vsyncadd [#allocation6], 0
      %s28 = sshll.u32 %s1, 4
      %s29 = int_to_ptr.hbm [resolvable:$true] %s28
      %s30 = sshll.u32 [#allocation5], 4
      %s31 = int_to_ptr.vmem [resolvable:$true] %s30
      %36 = dma.hbm_to_vmem [thread:$0]  %s29, 512, %s31, [#allocation6], 128, 128, 8
    $region9: #{tpu_custom_call.1} parent=1 // pred_fallthru
      _
    // Predicated region
    $region10: #{tpu_custom_call.1} parent=1 // pred_check
      _
    $region11: #{tpu_custom_call.1} parent=1 // pred_check_branch
      %38 = sbr.rel (0) target = $region13
    $region12: #{tpu_custom_call.1} parent=1 // pred_region
      _
    $region13: #{tpu_custom_call.1} parent=1 // pred_fallthru
      _
    // Predicated region
    $region14: #{tpu_custom_call.1} parent=1 // pred_check
      _
    $region15: #{tpu_custom_call.1} parent=1 // pred_check_branch
      %40 = sbr.rel (0) target = $region17
    $region16: #{tpu_custom_call.1} parent=1 // pred_region
      %42 = dma.done [#allocation3], 256
    $region17: #{tpu_custom_call.1} parent=1 // pred_fallthru
      _
    // Predicated region
    $region18: #{tpu_custom_call.1} parent=1 // pred_check
      _
    $region19: #{tpu_custom_call.1} parent=1 // pred_check_branch
      %44 = sbr.rel (0) target = $region21
    $region20: #{tpu_custom_call.1} parent=1 // pred_region
      %46 = dma.done [#allocation6], 512
    $region21: #{tpu_custom_call.1} parent=1 // pred_fallthru
      _
    %v47 = vld [vmem:[#allocation2] sm:$0xff]
    %v48 = vld [vmem:[#allocation2 + $0x8] sm:$0xff]
    %v49 = vld [vmem:[#allocation5] sm:$0xff]
    %v50 = vld [vmem:[#allocation5 + $0x8] sm:$0xff]
    %v51 = vld [vmem:[#allocation5 + $0x10] sm:$0xff]
    %v52 = vld [vmem:[#allocation5 + $0x18] sm:$0xff]
    %v53 = vld [vmem:[%s2] sm:$0x1]
    %v55 = vperm.slane %v53, 0
    %vm57 = vcmask 261120
    %v59 = vsel %vm57, %v47, 0
    %v62 = vsel %vm57, %v48, 0
    %64 = vmatpush.msra.mxu0 0.0
    %65 = vmatpush.msra.mxu0 0.0
    %66 = vmatpush.msra.mxu0 0.0
    %67 = vmatpush.msra.mxu0 0.0
    %68 = vmatpush.msra.mxu0 0.0
    %69 = vmatpush.msra.mxu0 0.0
    %70 = vmatpush.msra.mxu0 0.0
    %71 = vmatpush.msra.mxu0 0.0
    %72 = vmatpush.msra.mxu0 0.0
    %73 = vmatpush.msra.mxu0 0.0
    %74 = vmatpush.msra.mxu0 0.0
    %75 = vmatpush.msra.mxu0 0.0
    %76 = vmatpush.msra.mxu0 %v52
    %77 = vmatpush.msra.mxu0 %v51
    %78 = vmatpush.msra.mxu0 %v50
    %79 = vmatpush.msra.mxu0 %v49
    %80 = vmatmul.f32.gmra.mxu0 %v59
    %v81 = vpop.f32.mrf.mxu0
    %v82 = vadd.f32 %v55, %v81
    %83 = vmatmul.f32.gmra.mxu0 %v62
    %v84 = vpop.f32.mrf.mxu0
    %v85 = vadd.f32 %v55, %v84
    %86 = vdwg.mxu0
    %vm87 = vcmask 523264
    %88 = vst.msk [vmem:[#allocation7] sm:$0xff] %vm87, %v82
    %89 = vst.msk [vmem:[#allocation7 + $0x8] sm:$0xff] %vm87, %v85
    // Predicated region
    $region22: #{tpu_custom_call.1} parent=1 // pred_check
      _
    $region23: #{tpu_custom_call.1} parent=1 // pred_check_branch
      %91 = sbr.rel (0) target = $region25
    $region24: #{tpu_custom_call.1} parent=1 // pred_region
      %93 = vsyncadd [#allocation4], 0
      %s94 = sshll.u32 [#allocation7], 4
      %s95 = int_to_ptr.vmem [resolvable:$true] %s94
      %s96 = sshll.u32 %s3, 4
      %s97 = int_to_ptr.hbm [resolvable:$true] %s96
      %102 = dma.vmem_to_hbm [thread:$0]  %s95, 256, %s97, [#allocation4], 128, 128, 8
    $region25: #{tpu_custom_call.1} parent=1 // pred_fallthru
      _
    // Predicated region
    $region26: #{tpu_custom_call.1} parent=1 // pred_check
      _
    $region27: #{tpu_custom_call.1} parent=1 // pred_check_branch
      %104 = sbr.rel (0) target = $region29
    $region28: #{tpu_custom_call.1} parent=1 // pred_region
      %106 = dma.done [#allocation4], 256
    $region29: #{tpu_custom_call.1} parent=1 // pred_fallthru
      _
    %107 = vsyncpa [#allocation3], 1
    %108 = vsyncpa [#allocation6], 1
    %109 = vsyncpa [#allocation4], 1

</llo_original>
